<compile_context>
chip_gen: v7x
topology: tpu7x:2x2x1
jax: 0.10.0
libtpu: 0.0.40
codegen_flags: <defaults>
</compile_context>

<pallas_src>
import functools

import jax
import jax.numpy as jnp
import numpy as np
from jax import lax
from jax.experimental import pallas as pl
from jax.experimental.pallas import tpu as pltpu

_NEG_BIG = -1e30  # finite "-inf": masked lanes never produce inf/nan arithmetic


def _round_up(x, m):
    return (x + m - 1) // m * m


def _vmem_plan():
    """Generation-aware VMEM targets: (per-step slab budget, vmem_limit cap)."""
    try:
        cap = int(pltpu.get_tpu_info().vmem_capacity_bytes)
    except Exception:
        cap = 64 << 20  # conservative fallback (v7x-sized)
    if cap <= (80 << 20):            # v7x-class: 64 MiB per TensorCore
        return 24 << 20, 52 << 20
    return 64 << 20, 104 << 20       # v5e / v6e: 128 MiB per TensorCore


def _slab_bytes(ta, tn, d_pad, itemsize, use_mask):
    """Rough per-grid-step VMEM working-set estimate (buffers + f32 temporaries)."""
    work = 6 * tn * ta * 4                          # sim / masks / exp temporaries
    bufs = 2 * (tn + ta) * d_pad * itemsize         # double-buffered feature tiles
    if use_mask:
        bufs += 2 * tn * ta * 4                     # double-buffered [tn, ta] mask tile
    else:
        bufs += 2 * tn * 128 * 4 + 2 * 8 * ta * 4   # lane/sublane-padded label tiles
    bufs += (4 + 2) * 8 * ta * 4                    # scratch rows + output buffers
    return work + bufs


def _pick_tiles(a_rows, n_rows, d_pad, itemsize, use_mask, slab_budget):
    # Anchor axis: pad to a 128 multiple, pick ta as a 128-multiple divisor of
    # a_pad (no dead-lane waste beyond the mandatory 128 pad), preferring >= 2
    # blocks so the "parallel" grid axis can split across v7x's 2 TensorCores.
    a_pad = _round_up(a_rows, 128)
    m = a_pad // 128
    cands = [128 * t for t in range(1, m + 1) if m % t == 0 and 128 * t <= 512]
    split = [c for c in cands if a_pad // c >= 2]
    ta = max(split) if split else max(cands)
    # Contrast axis is streamed flash-style; tn is bounded only by the slab budget.
    tn = min(512, _round_up(n_rows, 8))
    while tn > 8 and _slab_bytes(ta, tn, d_pad, itemsize, use_mask) > slab_budget:
        tn = _round_up(tn // 2, 8)
    while ta > 128 and _slab_bytes(ta, tn, d_pad, itemsize, use_mask) > slab_budget:
        ta -= 128
        while a_pad % ta:
            ta -= 128
    n_pad = _round_up(n_rows, tn)
    return ta, a_pad, tn, n_pad


def _supcon_step(k, i, c_ref, a_ref, pos_fn, loss_ref, m_sc, l_sc, num_sc, den_sc,
                 *, temperature, anchor_block, contrast_block, n_rows):
    """One flash-style step over a [tn, ta] similarity tile (anchors on lanes)."""

    @pl.when(k == 0)
    def _():
        m_sc[...] = jnp.full_like(m_sc, _NEG_BIG)
        l_sc[...] = jnp.zeros_like(l_sc)
        num_sc[...] = jnp.zeros_like(num_sc)
        den_sc[...] = jnp.zeros_like(den_sc)

    # sim[r, c] = <contrast_r, anchor_c> / T ; contracts the last dim of both
    # operands so the MXU is fed directly (no in-kernel transpose).
    sim = lax.dot_general(
        c_ref[...], a_ref[...],
        dimension_numbers=(((1,), (1,)), ((), ())),
        preferred_element_type=jnp.float32) * (1.0 / temperature)    # [tn, ta]
    tn, ta = sim.shape

    # Self-exclusion + padded-contrast-row masks from tiny [tn,1]/[1,ta] iotas.
    r_ids = k * contrast_block + lax.broadcasted_iota(jnp.int32, (tn, 1), 0)
    c_ids = i * anchor_block + lax.broadcasted_iota(jnp.int32, (1, ta), 1)
    valid = (r_ids < n_rows) & (r_ids != c_ids)                      # [tn, ta] bool
    pos_f = pos_fn(valid)                                            # [tn, ta] f32

    # Online (flash-style) logsumexp over contrast rows.
    sim_m = jnp.where(valid, sim, _NEG_BIG)
    m_new = jnp.maximum(m_sc[...], jnp.max(sim_m, axis=0, keepdims=True))  # [1, ta]
    alpha = jnp.exp(m_sc[...] - m_new)
    p = jnp.where(valid, jnp.exp(sim - m_new), 0.0)
    l_sc[...] = alpha * l_sc[...] + jnp.sum(p, axis=0, keepdims=True)
    m_sc[...] = m_new

    # Positive-pair accumulators (shift-free: Σ pos*sim − den*LSE is exact).
    num_sc[...] += jnp.sum(pos_f * sim, axis=0, keepdims=True)
    den_sc[...] += jnp.sum(pos_f, axis=0, keepdims=True)

    @pl.when(k == pl.num_programs(1) - 1)
    def _():
        lse = m_sc[...] + jnp.log(l_sc[...])
        den = den_sc[...]
        # 0/0 -> NaN only for padded anchor lanes (sliced off by the wrapper)
        # and anchors with no positive pair (matches PyTorch's behaviour).
        mean_log_prob_pos = (num_sc[...] - den * lse) / den
        loss_ref[...] = (-temperature) * mean_log_prob_pos           # [1, ta]


def _supcon_labels_kernel(c_ref, a_ref, c_lbl_ref, a_lbl_ref, loss_ref,
                          m_sc, l_sc, num_sc, den_sc, *,
                          temperature, anchor_block, contrast_block, n_rows):
    def pos_fn(valid):
        # positive mask rebuilt in-kernel from tiny label vectors
        return ((c_lbl_ref[...] == a_lbl_ref[...]) & valid).astype(jnp.float32)

    _supcon_step(pl.program_id(1), pl.program_id(0), c_ref, a_ref, pos_fn,
                 loss_ref, m_sc, l_sc, num_sc, den_sc,
                 temperature=temperature, anchor_block=anchor_block,
                 contrast_block=contrast_block, n_rows=n_rows)


def _supcon_mask_kernel(c_ref, a_ref, mask_ref, loss_ref,
                        m_sc, l_sc, num_sc, den_sc, *,
                        temperature, anchor_block, contrast_block, n_rows):
    def pos_fn(valid):
        return jnp.where(valid, mask_ref[...], 0.0)

    _supcon_step(pl.program_id(1), pl.program_id(0), c_ref, a_ref, pos_fn,
                 loss_ref, m_sc, l_sc, num_sc, den_sc,
                 temperature=temperature, anchor_block=anchor_block,
                 contrast_block=contrast_block, n_rows=n_rows)


def supcon_loss(features, labels=None, mask=None, *, temperature=0.2,
                contrast_mode='all', matmul_dtype=jnp.bfloat16):
    """JAX/Pallas port of SupConLoss.forward. Returns a scalar loss."""
    if features.ndim < 3:
        raise ValueError('`features` needs to be [bsz, n_views, ...]')
    bsz, n_views = features.shape[0], features.shape[1]
    feats = features.reshape(bsz, n_views, -1).astype(jnp.float32)
    d = feats.shape[-1]
    if labels is not None and mask is not None:
        raise ValueError('Cannot define both `labels` and `mask`')

    # contrast_feature = cat(unbind(features, dim=1), dim=0) -> [N, D]
    contrast = jnp.transpose(feats, (1, 0, 2)).reshape(n_views * bsz, d)
    if contrast_mode == 'one':
        anchor, anchor_count = feats[:, 0], 1
    elif contrast_mode == 'all':
        anchor, anchor_count = contrast, n_views
    else:
        raise ValueError(f'Unknown mode: {contrast_mode}')

    a_rows, n_rows = anchor.shape[0], contrast.shape[0]
    use_mask = labels is None and mask is not None
    itemsize = jnp.dtype(matmul_dtype).itemsize
    d_pad = _round_up(d, 128)                  # lane-dense MXU contraction dim

    slab_budget, vmem_cap = _vmem_plan()
    ta, a_pad, tn, n_pad = _pick_tiles(a_rows, n_rows, d_pad, itemsize,
                                       use_mask, slab_budget)
    grid = (a_pad // ta, n_pad // tn)          # (parallel anchors, streamed contrast)

    # bf16 matmul operands (f32 accumulation); softmax / mask math stays f32.
    anchor_p = jnp.zeros((a_pad, d_pad), matmul_dtype).at[:a_rows, :d].set(
        anchor.astype(matmul_dtype))
    contrast_p = jnp.zeros((n_pad, d_pad), matmul_dtype).at[:n_rows, :d].set(
        contrast.astype(matmul_dtype))

    contrast_spec = pl.BlockSpec((tn, d_pad), lambda i, k: (k, 0))
    anchor_spec = pl.BlockSpec((ta, d_pad), lambda i, k: (i, 0))
    out_spec = pl.BlockSpec((1, ta), lambda i, k: (0, i))   # lane-dense, k-invariant

    common = dict(temperature=float(temperature), anchor_block=ta,
                  contrast_block=tn, n_rows=n_rows)

    if not use_mask:
        if labels is None:
            # SimCLR: eye(bsz) mask  <=>  "labels" are just the sample index.
            base_labels = jnp.arange(bsz, dtype=jnp.int32)
        else:
            base_labels = jnp.asarray(labels).reshape(-1).astype(jnp.int32)
            if base_labels.shape[0] != bsz:
                raise ValueError('Num of labels does not match num of features')
        c_lbl = jnp.full((n_pad, 1), -2, jnp.int32).at[:n_rows, 0].set(
            jnp.tile(base_labels, n_views))                           # [N_pad, 1]
        a_lbl = jnp.full((1, a_pad), -1, jnp.int32).at[0, :a_rows].set(
            jnp.tile(base_labels, anchor_count))                      # [1, A_pad]
        kernel = functools.partial(_supcon_labels_kernel, **common)
        in_specs = [contrast_spec, anchor_spec,
                    pl.BlockSpec((tn, 1), lambda i, k: (k, 0)),
                    pl.BlockSpec((1, ta), lambda i, k: (0, i))]
        args = (contrast_p, anchor_p, c_lbl, a_lbl)
        extra_bytes = n_pad * 128 * 4 + a_pad * 4                     # label traffic
    else:
        base_mask = jnp.asarray(mask).astype(jnp.float32)
        # mask.repeat(anchor_count, contrast_count), transposed to [N, A_pad] so
        # anchors sit on the lane axis inside the kernel.
        tiled = jnp.tile(base_mask.T, (n_views, anchor_count))        # [N, A]
        mask_p = jnp.zeros((n_pad, a_pad), jnp.float32).at[:n_rows, :a_rows].set(tiled)
        kernel = functools.partial(_supcon_mask_kernel, **common)
        in_specs = [contrast_spec, anchor_spec,
                    pl.BlockSpec((tn, ta), lambda i, k: (k, i))]
        args = (contrast_p, anchor_p, mask_p)
        extra_bytes = n_pad * a_pad * 4                               # mask traffic

    slab = _slab_bytes(ta, tn, d_pad, itemsize, use_mask)
    vmem_bytes = int(min(vmem_cap, max(16 << 20, 2 * slab)))
    compiler_params = pltpu.CompilerParams(
        dimension_semantics=("parallel", "arbitrary"),
        vmem_limit_bytes=vmem_bytes)
    cost = pl.CostEstimate(
        flops=2 * a_pad * n_pad * d_pad,
        transcendentals=a_pad * n_pad + a_pad * grid[1] + a_pad,
        bytes_accessed=(grid[0] * n_pad * d_pad + a_pad * d_pad) * itemsize
                       + extra_bytes + a_pad * 4)

    per_anchor = pl.pallas_call(
        kernel,
        out_shape=jax.ShapeDtypeStruct((1, a_pad), jnp.float32),
        grid=grid,
        in_specs=in_specs,
        out_specs=out_spec,
        scratch_shapes=[pltpu.VMEM((1, ta), jnp.float32)] * 4,  # m, l, num, den
        compiler_params=compiler_params,
        cost_estimate=cost,
    )(*args)

    # loss.view(anchor_count, batch_size).mean() == mean over all real anchors
    return jnp.mean(per_anchor[0, :a_rows])


def _supcon_loss_ref(features, labels=None, mask=None, *, temperature=0.2,
                     matmul_dtype=jnp.float32):
    """Pure-JAX reference (mirrors the PyTorch code) for validation."""
    bsz, n_views = features.shape[0], features.shape[1]
    feats = features.reshape(bsz, n_views, -1).astype(jnp.float32)
    if labels is None and mask is None:
        base_mask = jnp.eye(bsz, dtype=jnp.float32)
    elif labels is not None:
        lbl = labels.reshape(-1, 1)
        base_mask = (lbl == lbl.T).astype(jnp.float32)
    else:
        base_mask = mask.astype(jnp.float32)
    contrast = jnp.transpose(feats, (1, 0, 2)).reshape(n_views * bsz, -1)
    anchor = contrast
    adc = jnp.dot(anchor.astype(matmul_dtype), contrast.astype(matmul_dtype).T,
                  preferred_element_type=jnp.float32) / temperature
    logits = adc - jnp.max(adc, axis=1, keepdims=True)
    n = anchor.shape[0]
    logits_mask = 1.0 - jnp.eye(n, dtype=jnp.float32)
    m = jnp.tile(base_mask, (n_views, n_views)) * logits_mask
    exp_logits = jnp.exp(logits) * logits_mask
    log_prob = logits - jnp.log(jnp.sum(exp_logits, axis=1, keepdims=True))
    mean_log_prob_pos = jnp.sum(m * log_prob, axis=1) / jnp.sum(m, axis=1)
    return jnp.mean(-temperature * mean_log_prob_pos)


if __name__ == "__main__":
    key = jax.random.PRNGKey(0)
    k_feat, k_lbl = jax.random.split(key)

    bsz, n_views, dim = 8, 2, 32
    features = jax.random.normal(k_feat, (bsz, n_views, dim), dtype=jnp.float32)
    # L2-normalize (typical SupCon usage; keeps bf16 matmul numerically benign)
    features = features / jnp.linalg.norm(features, axis=-1, keepdims=True)
    labels = jax.random.randint(k_lbl, (bsz,), 0, 4)

    # Supervised (labels), unsupervised SimCLR (no labels), explicit-mask path.
    loss_sup = jax.block_until_ready(supcon_loss(features, labels=labels))
    loss_unsup = jax.block_until_ready(supcon_loss(features))
    eq_mask = (labels[:, None] == labels[None, :]).astype(jnp.float32)
    loss_mask = jax.block_until_ready(supcon_loss(features, mask=eq_mask))

    # Tight check vs a reference using the same bf16 matmul operands.
    ref_sup_bf16 = _supcon_loss_ref(features, labels=labels,
                                    matmul_dtype=jnp.bfloat16)
    ref_unsup_bf16 = _supcon_loss_ref(features, matmul_dtype=jnp.bfloat16)
    assert np.allclose(np.array(loss_sup), np.array(ref_sup_bf16),
                       rtol=1e-3, atol=1e-3), (loss_sup, ref_sup_bf16)
    assert np.allclose(np.array(loss_unsup), np.array(ref_unsup_bf16),
                       rtol=1e-3, atol=1e-3), (loss_unsup, ref_unsup_bf16)
    # Explicit-mask path must match the labels path (identical math).
    assert np.allclose(np.array(loss_mask), np.array(loss_sup),
                       rtol=1e-5, atol=1e-5), (loss_mask, loss_sup)
    # Loose check vs the exact-f32 PyTorch-equivalent math.
    ref_sup_f32 = _supcon_loss_ref(features, labels=labels)
    ref_unsup_f32 = _supcon_loss_ref(features)
    assert np.allclose(np.array(loss_sup), np.array(ref_sup_f32),
                       rtol=2e-2, atol=2e-2), (loss_sup, ref_sup_f32)
    assert np.allclose(np.array(loss_unsup), np.array(ref_unsup_f32),
                       rtol=2e-2, atol=2e-2), (loss_unsup, ref_unsup_f32)

    print("KERNEL_OK")
</pallas_src>

<mosaic_0001>
module attributes {stable_mosaic.version = 11 : i64} {
  func.func @_supcon_labels_kernel(%arg0: i32, %arg1: i32, %arg2: memref<16x128xbf16, #tpu.memory_space<vmem>>, %arg3: memref<128x128xbf16, #tpu.memory_space<vmem>>, %arg4: memref<16x1xi32, #tpu.memory_space<vmem>>, %arg5: memref<1x128xi32, #tpu.memory_space<vmem>>, %arg6: memref<1x128xf32, #tpu.memory_space<vmem>>, %arg7: memref<1x128xf32, #tpu.memory_space<vmem>>, %arg8: memref<1x128xf32, #tpu.memory_space<vmem>>, %arg9: memref<1x128xf32, #tpu.memory_space<vmem>>, %arg10: memref<1x128xf32, #tpu.memory_space<vmem>>) attributes {dimension_semantics = [#tpu.dimension_semantics<parallel>, #tpu.dimension_semantics<arbitrary>], iteration_bounds = array<i64: 1, 1>, scalar_prefetch = 0 : i64, scratch_operands = 4 : i64, tpu.core_type = #tpu.core_type<tc>, window_params = [{transform_indices = @transform_0, window_bounds = array<i64: 16, 128>}, {transform_indices = @transform_1, window_bounds = array<i64: 128, 128>}, {transform_indices = @transform_2, window_bounds = array<i64: 16, 1>}, {transform_indices = @transform_3, window_bounds = array<i64: 1, 128>}, {transform_indices = @transform_4, window_bounds = array<i64: 1, 128>}]} {
    %c0_i32 = arith.constant 0 : i32
    %0 = arith.cmpi eq, %arg1, %c0_i32 : i32
    %1 = arith.extui %0 : i1 to i32
    %c0_i32_0 = arith.constant 0 : i32
    %2 = arith.cmpi ne, %1, %c0_i32_0 : i32
    scf.if %2 {
      %cst_36 = arith.constant -1.000000e+30 : f32
      %66 = vector.broadcast %cst_36 : f32 to vector<1x128xf32>
      %c0_37 = arith.constant 0 : index
      %c0_38 = arith.constant 0 : index
      %67 = vector.load %arg7[%c0_37, %c0_38] : memref<1x128xf32, #tpu.memory_space<vmem>>, vector<1x128xf32>
      tpu.vector_store %arg7[%c0_37, %c0_38], %66 {strides = array<i32>} : memref<1x128xf32, #tpu.memory_space<vmem>>, vector<1x128xf32>,
      %cst_39 = arith.constant 0.000000e+00 : f32
      %68 = vector.broadcast %cst_39 : f32 to vector<1x128xf32>
      %c0_40 = arith.constant 0 : index
      %c0_41 = arith.constant 0 : index
      %69 = vector.load %arg8[%c0_40, %c0_41] : memref<1x128xf32, #tpu.memory_space<vmem>>, vector<1x128xf32>
      tpu.vector_store %arg8[%c0_40, %c0_41], %68 {strides = array<i32>} : memref<1x128xf32, #tpu.memory_space<vmem>>, vector<1x128xf32>,
      %cst_42 = arith.constant 0.000000e+00 : f32
      %70 = vector.broadcast %cst_42 : f32 to vector<1x128xf32>
      %c0_43 = arith.constant 0 : index
      %c0_44 = arith.constant 0 : index
      %71 = vector.load %arg9[%c0_43, %c0_44] : memref<1x128xf32, #tpu.memory_space<vmem>>, vector<1x128xf32>
      tpu.vector_store %arg9[%c0_43, %c0_44], %70 {strides = array<i32>} : memref<1x128xf32, #tpu.memory_space<vmem>>, vector<1x128xf32>,
      %cst_45 = arith.constant 0.000000e+00 : f32
      %72 = vector.broadcast %cst_45 : f32 to vector<1x128xf32>
      %c0_46 = arith.constant 0 : index
      %c0_47 = arith.constant 0 : index
      %73 = vector.load %arg10[%c0_46, %c0_47] : memref<1x128xf32, #tpu.memory_space<vmem>>, vector<1x128xf32>
      tpu.vector_store %arg10[%c0_46, %c0_47], %72 {strides = array<i32>} : memref<1x128xf32, #tpu.memory_space<vmem>>, vector<1x128xf32>,
    } else {
    }
    %c0 = arith.constant 0 : index
    %c0_1 = arith.constant 0 : index
    %3 = vector.load %arg2[%c0, %c0_1] : memref<16x128xbf16, #tpu.memory_space<vmem>>, vector<16x128xbf16>
    %c0_2 = arith.constant 0 : index
    %c0_3 = arith.constant 0 : index
    %4 = vector.load %arg3[%c0_2, %c0_3] : memref<128x128xbf16, #tpu.memory_space<vmem>>, vector<128x128xbf16>
    %cst = arith.constant dense<0.000000e+00> : vector<16x128xf32>
    %5 = tpu.matmul %3, %4, %cst {dimension_numbers = #tpu.dot_dimension_numbers<[1], [1], [0], [0], [0, 0, 1, 0], [], []>} : vector<16x128xbf16>, vector<128x128xbf16>, vector<16x128xf32> -> vector<16x128xf32>
    %cst_4 = arith.constant 5.000000e+00 : f32
    %6 = vector.broadcast %cst_4 : f32 to vector<16x128xf32>
    %7 = arith.mulf %5, %6 : vector<16x128xf32>
    %c16_i32 = arith.constant 16 : i32
    %8 = arith.muli %arg1, %c16_i32 : i32
    %9 = tpu.iota {dimensions = array<i32: 0>} : vector<16x1xi32>
    %10 = vector.broadcast %8 : i32 to vector<16x1xi32>
    %11 = arith.addi %10, %9 : vector<16x1xi32>
    %c128_i32 = arith.constant 128 : i32
    %12 = arith.muli %arg0, %c128_i32 : i32
    %13 = tpu.iota {dimensions = array<i32: 1>} : vector<1x128xi32>
    %14 = vector.broadcast %12 : i32 to vector<1x128xi32>
    %15 = arith.addi %14, %13 : vector<1x128xi32>
    %c16_i32_5 = arith.constant 16 : i32
    %16 = vector.broadcast %c16_i32_5 : i32 to vector<16x1xi32>
    %17 = arith.cmpi slt, %11, %16 : vector<16x1xi32>
    %18 = vector.broadcast %11 : vector<16x1xi32> to vector<16x128xi32>
    %19 = vector.broadcast %15 : vector<1x128xi32> to vector<16x128xi32>
    %20 = arith.cmpi ne, %18, %19 : vector<16x128xi32>
    %21 = vector.broadcast %17 : vector<16x1xi1> to vector<16x128xi1>
    %22 = arith.andi %21, %20 : vector<16x128xi1>
    %c0_6 = arith.constant 0 : index
    %c0_7 = arith.constant 0 : index
    %23 = vector.load %arg4[%c0_6, %c0_7] : memref<16x1xi32, #tpu.memory_space<vmem>>, vector<16x1xi32>
    %c0_8 = arith.constant 0 : index
    %c0_9 = arith.constant 0 : index
    %24 = vector.load %arg5[%c0_8, %c0_9] : memref<1x128xi32, #tpu.memory_space<vmem>>, vector<1x128xi32>
    %25 = vector.broadcast %23 : vector<16x1xi32> to vector<16x128xi32>
    %26 = vector.broadcast %24 : vector<1x128xi32> to vector<16x128xi32>
    %27 = arith.cmpi eq, %25, %26 : vector<16x128xi32>
    %28 = arith.andi %27, %22 : vector<16x128xi1>
    %29 = arith.extui %28 : vector<16x128xi1> to vector<16x128xi32>
    %30 = arith.sitofp %29 : vector<16x128xi32> to vector<16x128xf32>
    %cst_10 = arith.constant -1.000000e+30 : f32
    %31 = vector.broadcast %cst_10 : f32 to vector<16x128xf32>
    %32 = arith.select %22, %7, %31 : vector<16x128xi1>, vector<16x128xf32>
    %c0_11 = arith.constant 0 : index
    %c0_12 = arith.constant 0 : index
    %33 = vector.load %arg7[%c0_11, %c0_12] : memref<1x128xf32, #tpu.memory_space<vmem>>, vector<1x128xf32>
    %cst_13 = arith.constant dense<0xFF800000> : vector<128xf32>
    %34 = vector.multi_reduction <maximumf>, %32, %cst_13 [0] : vector<16x128xf32> to vector<128xf32>
    %35 = vector.shape_cast %34 : vector<128xf32> to vector<1x128xf32>
    %36 = arith.maximumf %33, %35 : vector<1x128xf32>
    %c0_14 = arith.constant 0 : index
    %c0_15 = arith.constant 0 : index
    %37 = vector.load %arg7[%c0_14, %c0_15] : memref<1x128xf32, #tpu.memory_space<vmem>>, vector<1x128xf32>
    %38 = arith.subf %37, %36 : vector<1x128xf32>
    %39 = math.exp %38 : vector<1x128xf32>
    %40 = vector.broadcast %36 : vector<1x128xf32> to vector<16x128xf32>
    %41 = arith.subf %7, %40 : vector<16x128xf32>
    %42 = math.exp %41 : vector<16x128xf32>
    %cst_16 = arith.constant 0.000000e+00 : f32
    %43 = vector.broadcast %cst_16 : f32 to vector<16x128xf32>
    %44 = arith.select %22, %42, %43 : vector<16x128xi1>, vector<16x128xf32>
    %c0_17 = arith.constant 0 : index
    %c0_18 = arith.constant 0 : index
    %45 = vector.load %arg8[%c0_17, %c0_18] : memref<1x128xf32, #tpu.memory_space<vmem>>, vector<1x128xf32>
    %46 = arith.mulf %39, %45 : vector<1x128xf32>
    %cst_19 = arith.constant dense<0.000000e+00> : vector<128xf32>
    %47 = vector.multi_reduction <add>, %44, %cst_19 [0] : vector<16x128xf32> to vector<128xf32>
    %48 = vector.shape_cast %47 : vector<128xf32> to vector<1x128xf32>
    %49 = arith.addf %46, %48 : vector<1x128xf32>
    %c0_20 = arith.constant 0 : index
    %c0_21 = arith.constant 0 : index
    %50 = vector.load %arg8[%c0_20, %c0_21] : memref<1x128xf32, #tpu.memory_space<vmem>>, vector<1x128xf32>
    tpu.vector_store %arg8[%c0_20, %c0_21], %49 {strides = array<i32>} : memref<1x128xf32, #tpu.memory_space<vmem>>, vector<1x128xf32>,
    %c0_22 = arith.constant 0 : index
    %c0_23 = arith.constant 0 : index
    %51 = vector.load %arg7[%c0_22, %c0_23] : memref<1x128xf32, #tpu.memory_space<vmem>>, vector<1x128xf32>
    tpu.vector_store %arg7[%c0_22, %c0_23], %36 {strides = array<i32>} : memref<1x128xf32, #tpu.memory_space<vmem>>, vector<1x128xf32>,
    %c0_24 = arith.constant 0 : index
    %c0_25 = arith.constant 0 : index
    %52 = vector.load %arg9[%c0_24, %c0_25] : memref<1x128xf32, #tpu.memory_space<vmem>>, vector<1x128xf32>
    %53 = arith.mulf %30, %7 : vector<16x128xf32>
    %cst_26 = arith.constant dense<0.000000e+00> : vector<128xf32>
    %54 = vector.multi_reduction <add>, %53, %cst_26 [0] : vector<16x128xf32> to vector<128xf32>
    %55 = vector.shape_cast %54 : vector<128xf32> to vector<1x128xf32>
    %56 = arith.addf %52, %55 : vector<1x128xf32>
    %c0_27 = arith.constant 0 : index
    %c0_28 = arith.constant 0 : index
    %57 = vector.load %arg9[%c0_27, %c0_28] : memref<1x128xf32, #tpu.memory_space<vmem>>, vector<1x128xf32>
    tpu.vector_store %arg9[%c0_27, %c0_28], %56 {strides = array<i32>} : memref<1x128xf32, #tpu.memory_space<vmem>>, vector<1x128xf32>,
    %c0_29 = arith.constant 0 : index
    %c0_30 = arith.constant 0 : index
    %58 = vector.load %arg10[%c0_29, %c0_30] : memref<1x128xf32, #tpu.memory_space<vmem>>, vector<1x128xf32>
    %cst_31 = arith.constant dense<0.000000e+00> : vector<128xf32>
    %59 = vector.multi_reduction <add>, %30, %cst_31 [0] : vector<16x128xf32> to vector<128xf32>
    %60 = vector.shape_cast %59 : vector<128xf32> to vector<1x128xf32>
    %61 = arith.addf %58, %60 : vector<1x128xf32>
    %c0_32 = arith.constant 0 : index
    %c0_33 = arith.constant 0 : index
    %62 = vector.load %arg10[%c0_32, %c0_33] : memref<1x128xf32, #tpu.memory_space<vmem>>, vector<1x128xf32>
    tpu.vector_store %arg10[%c0_32, %c0_33], %61 {strides = array<i32>} : memref<1x128xf32, #tpu.memory_space<vmem>>, vector<1x128xf32>,
    %c0_i32_34 = arith.constant 0 : i32
    %63 = arith.cmpi eq, %arg1, %c0_i32_34 : i32
    %64 = arith.extui %63 : i1 to i32
    %c0_i32_35 = arith.constant 0 : i32
    %65 = arith.cmpi ne, %64, %c0_i32_35 : i32
    scf.if %65 {
      %c0_36 = arith.constant 0 : index
      %c0_37 = arith.constant 0 : index
      %66 = vector.load %arg7[%c0_36, %c0_37] : memref<1x128xf32, #tpu.memory_space<vmem>>, vector<1x128xf32>
      %c0_38 = arith.constant 0 : index
      %c0_39 = arith.constant 0 : index
      %67 = vector.load %arg8[%c0_38, %c0_39] : memref<1x128xf32, #tpu.memory_space<vmem>>, vector<1x128xf32>
      %68 = math.log %67 : vector<1x128xf32>
      %69 = arith.addf %66, %68 : vector<1x128xf32>
      %c0_40 = arith.constant 0 : index
      %c0_41 = arith.constant 0 : index
      %70 = vector.load %arg10[%c0_40, %c0_41] : memref<1x128xf32, #tpu.memory_space<vmem>>, vector<1x128xf32>
      %c0_42 = arith.constant 0 : index
      %c0_43 = arith.constant 0 : index
      %71 = vector.load %arg9[%c0_42, %c0_43] : memref<1x128xf32, #tpu.memory_space<vmem>>, vector<1x128xf32>
      %72 = arith.mulf %70, %69 : vector<1x128xf32>
      %73 = arith.subf %71, %72 : vector<1x128xf32>
      %74 = arith.divf %73, %70 : vector<1x128xf32>
      %cst_44 = arith.constant -2.000000e-01 : f32
      %75 = vector.broadcast %cst_44 : f32 to vector<1x128xf32>
      %76 = arith.mulf %75, %74 : vector<1x128xf32>
      %c0_45 = arith.constant 0 : index
      %c0_46 = arith.constant 0 : index
      %77 = vector.load %arg6[%c0_45, %c0_46] : memref<1x128xf32, #tpu.memory_space<vmem>>, vector<1x128xf32>
      tpu.vector_store %arg6[%c0_45, %c0_46], %76 {strides = array<i32>} : memref<1x128xf32, #tpu.memory_space<vmem>>, vector<1x128xf32>,
    } else {
    }
    return
  }
  func.func @transform_0(%arg0: i32, %arg1: i32) -> (i32, i32) {
    %c0_i32 = arith.constant 0 : i32
    %c0_i32_0 = arith.constant 0 : i32
    return %arg1, %c0_i32 : i32, i32
  }
  func.func @transform_1(%arg0: i32, %arg1: i32) -> (i32, i32) {
    %c0_i32 = arith.constant 0 : i32
    %c0_i32_0 = arith.constant 0 : i32
    return %arg0, %c0_i32 : i32, i32
  }
  func.func @transform_2(%arg0: i32, %arg1: i32) -> (i32, i32) {
    %c0_i32 = arith.constant 0 : i32
    %c0_i32_0 = arith.constant 0 : i32
    return %arg1, %c0_i32 : i32, i32
  }
  func.func @transform_3(%arg0: i32, %arg1: i32) -> (i32, i32) {
    %c0_i32 = arith.constant 0 : i32
    %c0_i32_0 = arith.constant 0 : i32
    return %c0_i32, %arg0 : i32, i32
  }
  func.func @transform_4(%arg0: i32, %arg1: i32) -> (i32, i32) {
    %c0_i32 = arith.constant 0 : i32
    %c0_i32_0 = arith.constant 0 : i32
    return %c0_i32, %arg0 : i32, i32
  }
}

</mosaic_0001>

<llo_original>
// kernel: tpu_custom_call.1
$region0: #{tpu_custom_call.1}
  #allocation0 [shape = 'u32[]', space=smem, size = 0x4, offset = 0x4, fixed_abs, tag = 'smem constant byte address 0x4 - core index']
  #allocation1 [shape = 'u32[144,128]{1,0:T(1,128)}', space=vmem, size = 0x12000, scoped, tag = 'internal scratch']
  #allocation2 [shape = 'f32[1,128]{1,0:T(1,128)}', space=vmem, size = 0x200, scoped, tag = 'scratch operand']
  #allocation3 [shape = 'f32[1,128]{1,0:T(1,128)}', space=vmem, size = 0x200, scoped, tag = 'scratch operand']
  #allocation4 [shape = 'f32[1,128]{1,0:T(1,128)}', space=vmem, size = 0x200, scoped, tag = 'scratch operand']
  #allocation5 [shape = 'f32[1,128]{1,0:T(1,128)}', space=vmem, size = 0x200, scoped, tag = 'scratch operand']
  %s0 = inlined_call_operand.vmem [shape: bf16[16,128], index: 0, kind: input, shape index: {}]
  %s1 = inlined_call_operand.hbm [shape: bf16[128,128], index: 1, kind: input, shape index: {}]
  %s2 = inlined_call_operand.vmem [shape: s32[16,1], index: 2, kind: input, shape index: {}]
  %s3 = inlined_call_operand.vmem [shape: s32[1,128], index: 3, kind: input, shape index: {}]
  %s4 = inlined_call_operand.hbm [shape: f32[1,128], index: 4, kind: output, shape index: {}]
  %s5 = sld [smem:[#allocation0]]
  $region38: #{tpu_custom_call.1} parent=0
    _
  %s7 = ssub.s32 1, %s5
  %s8 = scalar_select 0, %s7, %s5
  $region1: #{tpu_custom_call.1} parent=0
    #allocation6 [shape = 'u8[32768]{0}', space=vmem, size = 0x8000, scoped, tag = 'input window, operand 1, single buffered']
    #allocation7 [shape = 's32[1]{0}', space=sflag, size = 0x4, scoped, tag = 'scoped memory for tpu_custom_call.1']
    #allocation8 [shape = 's32[1]{0}', space=sflag, size = 0x4, scoped, tag = 'scoped memory for tpu_custom_call.1']
    #allocation9 [shape = 'u8[512]{0}', space=vmem, size = 0x400, scoped, tag = 'output window, operand 0, single buffered']
    %9 = vsyncpa [#allocation7], 0
    %10 = vsyncpa [#allocation8], 0
    // Predicated region
    $region2: #{tpu_custom_call.1} parent=1 // pred_check
      _
    $region3: #{tpu_custom_call.1} parent=1 // pred_check_branch
      %12 = sbr.rel (0) target = $region5
    $region4: #{tpu_custom_call.1} parent=1 // pred_region
      _
    $region5: #{tpu_custom_call.1} parent=1 // pred_fallthru
      _
    // Predicated region
    $region6: #{tpu_custom_call.1} parent=1 // pred_check
      _
    $region7: #{tpu_custom_call.1} parent=1 // pred_check_branch
      %14 = sbr.rel (0) target = $region9
    $region8: #{tpu_custom_call.1} parent=1 // pred_region
      %s16 = ssub.s32 1024, 1024
      %17 = vsyncadd [#allocation7], %s16
      %s18 = sshll.u32 [#allocation6], 4
      %s19 = int_to_ptr.vmem [resolvable:$true] %s18
      %24 = dma.hbm_to_vmem [thread:$0]  %s1, 1024, %s19, [#allocation7], 64, 64, 4
    $region9: #{tpu_custom_call.1} parent=1 // pred_fallthru
      _
    // Predicated region
    $region10: #{tpu_custom_call.1} parent=1 // pred_check
      _
    $region11: #{tpu_custom_call.1} parent=1 // pred_check_branch
      %26 = sbr.rel (0) target = $region13
    $region12: #{tpu_custom_call.1} parent=1 // pred_region
      _
    $region13: #{tpu_custom_call.1} parent=1 // pred_fallthru
      _
    // Predicated region
    $region14: #{tpu_custom_call.1} parent=1 // pred_check
      _
    $region15: #{tpu_custom_call.1} parent=1 // pred_check_branch
      %28 = sbr.rel (0) target = $region17
    $region16: #{tpu_custom_call.1} parent=1 // pred_region
      _
    $region17: #{tpu_custom_call.1} parent=1 // pred_fallthru
      _
    // Predicated region
    $region18: #{tpu_custom_call.1} parent=1 // pred_check
      _
    $region19: #{tpu_custom_call.1} parent=1 // pred_check_branch
      %30 = sbr.rel (0) target = $region21
    $region20: #{tpu_custom_call.1} parent=1 // pred_region
      %31 = dma.done [#allocation7], 1024
    $region21: #{tpu_custom_call.1} parent=1 // pred_fallthru
      _
    %p33 = scmp.eq.s32.totalorder 0, 0
    // Predicated region
    $region22: #{tpu_custom_call.1} parent=1 // pred_check
      %p34 = pneg %p33
    $region23: #{tpu_custom_call.1} parent=1 // pred_check_branch
      %36 = sbr.rel (%p34) target = $region25
    $region24: #{tpu_custom_call.1} parent=1 // pred_region
      %37 = vst [vmem:[#allocation2] sm:$0x1] -1e+30
      %38 = vst [vmem:[#allocation3] sm:$0x1] 0.0
      %39 = vst [vmem:[#allocation4] sm:$0x1] 0.0
      %40 = vst [vmem:[#allocation5] sm:$0x1] 0.0
    $region25: #{tpu_custom_call.1} parent=1 // pred_fallthru
      _
    %v41 = vld [vmem:[%s0] sm:$0xf]
    %v42 = vld [vmem:[%s0 + $0x4] sm:$0xf]
    %v43 = vld [vmem:[#allocation6] sm:$0xf]
    %v44 = vld [vmem:[#allocation6 + $0x4] sm:$0xf]
    %v45 = vld [vmem:[#allocation6 + $0x8] sm:$0xf]
    %v46 = vld [vmem:[#allocation6 + $0xc] sm:$0xf]
    %v47 = vld [vmem:[#allocation6 + $0x10] sm:$0xf]
    %v48 = vld [vmem:[#allocation6 + $0x14] sm:$0xf]
    %v49 = vld [vmem:[#allocation6 + $0x18] sm:$0xf]
    %v50 = vld [vmem:[#allocation6 + $0x1c] sm:$0xf]
    %v51 = vld [vmem:[#allocation6 + $0x20] sm:$0xf]
    %v52 = vld [vmem:[#allocation6 + $0x24] sm:$0xf]
    %v53 = vld [vmem:[#allocation6 + $0x28] sm:$0xf]
    %v54 = vld [vmem:[#allocation6 + $0x2c] sm:$0xf]
    %v55 = vld [vmem:[#allocation6 + $0x30] sm:$0xf]
    %v56 = vld [vmem:[#allocation6 + $0x34] sm:$0xf]
    %v57 = vld [vmem:[#allocation6 + $0x38] sm:$0xf]
    %v58 = vld [vmem:[#allocation6 + $0x3c] sm:$0xf]
    %v61 = vunpack.c.l.b16 %v41
    %v62 = vunpack.c.l.b16 %v42
    %v63 = vpack.c.b16 %v62, %v61
    %v81 = vunpack.c.l.b16 %v43
    %v82 = vunpack.c.l.b16 %v44
    %v83 = vunpack.c.l.b16 %v45
    %v84 = vunpack.c.l.b16 %v46
    %v85 = vunpack.c.l.b16 %v47
    %v86 = vunpack.c.l.b16 %v48
    %v87 = vunpack.c.l.b16 %v49
    %v88 = vunpack.c.l.b16 %v50
    %v89 = vunpack.c.l.b16 %v51
    %v90 = vunpack.c.l.b16 %v52
    %v91 = vunpack.c.l.b16 %v53
    %v92 = vunpack.c.l.b16 %v54
    %v93 = vunpack.c.l.b16 %v55
    %v94 = vunpack.c.l.b16 %v56
    %v95 = vunpack.c.l.b16 %v57
    %v96 = vunpack.c.l.b16 %v58
    %v97 = vpack.c.b16 %v82, %v81
    %v98 = vpack.c.b16 %v84, %v83
    %v99 = vpack.c.b16 %v86, %v85
    %v100 = vpack.c.b16 %v88, %v87
    %v101 = vpack.c.b16 %v90, %v89
    %v102 = vpack.c.b16 %v92, %v91
    %v103 = vpack.c.b16 %v94, %v93
    %v104 = vpack.c.b16 %v96, %v95
    %113 = vmatprep.subr.bf16.mxu0 0
    %114 = vmatpush1.bf16.xpose.msra.mxu0 %v97
    %115 = vmatprep.subr.bf16.mxu0 0
    %116 = vmatpush1.bf16.xpose.msra.mxu0 %v98
    %117 = vmatprep.subr.bf16.mxu0 0
    %118 = vmatpush1.bf16.xpose.msra.mxu0 %v99
    %119 = vmatprep.subr.bf16.mxu0 0
    %120 = vmatpush1.bf16.xpose.msra.mxu0 %v100
    %121 = vmatprep.subr.bf16.mxu0 0
    %122 = vmatpush1.bf16.xpose.msra.mxu0 %v101
    %123 = vmatprep.subr.bf16.mxu0 0
    %124 = vmatpush1.bf16.xpose.msra.mxu0 %v102
    %125 = vmatprep.subr.bf16.mxu0 0
    %126 = vmatpush1.bf16.xpose.msra.mxu0 %v103
    %127 = vmatprep.subr.bf16.mxu0 0
    %128 = vmatpush1.bf16.xpose.msra.mxu0 %v104
    %129 = vmatprep.subr.bf16.mxu0 0
    %130 = vmatpush1.bf16.xpose.msra.mxu0 0
    %131 = vmatprep.subr.bf16.mxu0 0
    %132 = vmatpush1.bf16.xpose.msra.mxu0 0
    %133 = vmatprep.subr.bf16.mxu0 0
    %134 = vmatpush1.bf16.xpose.msra.mxu0 0
    %135 = vmatprep.subr.bf16.mxu0 0
    %136 = vmatpush1.bf16.xpose.msra.mxu0 0
    %137 = vmatprep.subr.bf16.mxu0 0
    %138 = vmatpush1.bf16.xpose.msra.mxu0 0
    %139 = vmatprep.subr.bf16.mxu0 0
    %140 = vmatpush1.bf16.xpose.msra.mxu0 0
    %141 = vmatprep.subr.bf16.mxu0 0
    %142 = vmatpush1.bf16.xpose.msra.mxu0 0
    %143 = vmatprep.subr.bf16.mxu0 0
    %144 = vmatpush1.bf16.xpose.msra.mxu0 0
    %145 = vmatprep.mubr.bf16.mxu0 0
    %146 = vmatmul.mubr.bf16.gmra.mrb[0].mxu0 %v63
    %v147 = vpop.f32.mrb[0].mxu0
    %v148 = vadd.f32 0.0, %v147
    %v149 = vpop.f32.mrb[0].mxu0
    %v150 = vpop.f32.mrb[0].mxu0
    %v151 = vadd.f32 0.0, %v150
    %v152 = vpop.f32.mrb[0].mxu0
    %153 = vdwg.mxu0
    %v154 = vmul.f32 %v148, 5.0
    %v155 = vmul.f32 %v151, 5.0
    %s156 = smul.u32 0, 16
    %v157 = vlaneseq
    %v158 = vshrl.u32 %v157, 7
    %v159 = vadd.s32 %v158, 8
    %v160 = vstv %s156
    %v161 = vadd.s32 %v160, %v158
    %v162 = vadd.s32 %v160, %v159
    %s163 = smul.u32 0, 128
    %v164 = vlaneseq
    %v165 = vand.u32 %v164, 127
    %v166 = vstv %s163
    %v167 = vadd.s32 %v166, %v165
    %vm168 = vcmp.lt.s32.totalorder %v161, 16
    %vm169 = vcmp.lt.s32.totalorder %v162, 16
    %vm170 = vcmp.ne.s32.totalorder %v161, %v167
    %vm171 = vcmp.ne.s32.totalorder %v162, %v167
    %v172 = vsel %vm168, 1, 0
    %v173 = vsel %vm169, 1, 0
    %vm174 = vcmp.eq.s32.totalorder %v172, 1
    %vm175 = vcmp.eq.s32.totalorder %v173, 1
    %vm176 = vmand %vm174, %vm170
    %vm177 = vmand %vm175, %vm171
    %v178 = vld [vmem:[%s2] sm:$0xff]
    %v179 = vld [vmem:[%s2 + $0x8] sm:$0xff]
    %v180 = vld [vmem:[%s3] sm:$0x1]
    %181 = vset.pattern.permute.xlu0 0
    %182 = vperm.xlu0 %181, %v178
    %v183 = vpop.permute.xlu0 %182
    %184 = vset.pattern.permute.xlu0 0
    %185 = vperm.xlu0 %184, %v179
    %v186 = vpop.permute.xlu0 %185
    %v187 = vlaneseq
    %v188 = vshrl.u32 %v187, 7
    %v189 = vsub.s32 0, %v188
    %v190 = vrot.slane %v180, %v189
    %vm191 = vcmp.eq.s32.totalorder %v183, %v190
    %vm192 = vcmp.eq.s32.totalorder %v186, %v190
    %vm193 = vmand %vm191, %vm176
    %vm194 = vmand %vm192, %vm177
    %v195 = vsel %vm193, 1, 0
    %v196 = vsel %vm194, 1, 0
    %v197 = vcvt.s32.f32 %v195
    %v198 = vcvt.s32.f32 %v196
    %v199 = vsel %vm176, %v154, -1e+30
    %v200 = vsel %vm177, %v155, -1e+30
    %v201 = vld [vmem:[#allocation2] sm:$0x1]
    %v202 = vmax.f32 %v199, %v200
    %v203 = vrot.slane %v202, 4
    %v204 = vmax.f32 %v202, %v203
    %v205 = vrot.slane %v204, 2
    %v206 = vmax.f32 %v204, %v205
    %v207 = vrot.slane %v206, 1
    %v208 = vmax.f32 %v206, %v207
    %v209 = vmax.f32 %v201, %v208
    %v210 = vsub.f32 %v201, %v209
    %v211 = vmul.f32 %v210, 1.442695
    %v212 = vpow.pop %v211
    %v214 = vlaneseq
    %v215 = vshrl.u32 %v214, 7
    %v216 = vsub.s32 0, %v215
    %v217 = vrot.slane %v209, %v216
    %v219 = vsub.f32 %v154, %v217
    %v220 = vsub.f32 %v155, %v217
    %v221 = vmul.f32 %v219, 1.442695
    %v222 = vpow.pop %v221
    %v223 = vmul.f32 %v220, 1.442695
    %v224 = vpow.pop %v223
    %v225 = vsel %vm176, %v222, 0.0
    %v226 = vsel %vm177, %v224, 0.0
    %v227 = vld [vmem:[#allocation3] sm:$0x1]
    %v228 = vmul.f32 %v212, %v227
    %v229 = vadd.f32 %v225, %v226
    %v230 = vrot.slane %v229, 4
    %v231 = vadd.f32 %v229, %v230
    %v232 = vrot.slane %v231, 2
    %v233 = vadd.f32 %v231, %v232
    %v234 = vrot.slane %v233, 1
    %v235 = vadd.f32 %v233, %v234
    %v236 = vadd.f32 %v228, %v235
    %237 = vst [vmem:[#allocation3] sm:$0x1] %v236
    %238 = vst [vmem:[#allocation2] sm:$0x1] %v209
    %v239 = vld [vmem:[#allocation4] sm:$0x1]
    %v240 = vmul.f32 %v197, %v154
    %v241 = vmul.f32 %v198, %v155
    %v242 = vadd.f32 %v240, %v241
    %v243 = vrot.slane %v242, 4
    %v244 = vadd.f32 %v242, %v243
    %v245 = vrot.slane %v244, 2
    %v246 = vadd.f32 %v244, %v245
    %v247 = vrot.slane %v246, 1
    %v248 = vadd.f32 %v246, %v247
    %v249 = vadd.f32 %v239, %v248
    %250 = vst [vmem:[#allocation4] sm:$0x1] %v249
    %v251 = vld [vmem:[#allocation5] sm:$0x1]
    %v252 = vadd.f32 %v197, %v198
    %v253 = vrot.slane %v252, 4
    %v254 = vadd.f32 %v252, %v253
    %v255 = vrot.slane %v254, 2
    %v256 = vadd.f32 %v254, %v255
    %v257 = vrot.slane %v256, 1
    %v258 = vadd.f32 %v256, %v257
    %v259 = vadd.f32 %v251, %v258
    %260 = vst [vmem:[#allocation5] sm:$0x1] %v259
    // Predicated region
    $region26: #{tpu_custom_call.1} parent=1 // pred_check
      %p261 = pneg %p33
    $region27: #{tpu_custom_call.1} parent=1 // pred_check_branch
      %263 = sbr.rel (%p261) target = $region29
    $region28: #{tpu_custom_call.1} parent=1 // pred_region
      %v264 = vld [vmem:[#allocation2] sm:$0x1]
      %v265 = vld [vmem:[#allocation3] sm:$0x1]
      %v266 = vlog2.pop %v265
      %v267 = vmul.f32 %v266, 0.6931472
      %v268 = vadd.f32 %v264, %v267
      %v269 = vld [vmem:[#allocation5] sm:$0x1]
      %v270 = vld [vmem:[#allocation4] sm:$0x1]
      %v271 = vmul.f32 %v269, %v268
      %v272 = vsub.f32 %v270, %v271
      %v273 = vrcp.pop %v269
      %v274 = vmul.f32 %v272, %v273
      %v275 = vmul.f32 %v274, -0.2
      %276 = vst [vmem:[#allocation9] sm:$0x1] %v275
    $region29: #{tpu_custom_call.1} parent=1 // pred_fallthru
      _
    // Predicated region
    $region30: #{tpu_custom_call.1} parent=1 // pred_check
      _
    $region31: #{tpu_custom_call.1} parent=1 // pred_check_branch
      %278 = sbr.rel (0) target = $region33
    $region32: #{tpu_custom_call.1} parent=1 // pred_region
      %s280 = ssub.s32 16, 16
      %281 = vsyncadd [#allocation8], %s280
      %s283 = sshll.u32 [#allocation9], 4
      %s284 = int_to_ptr.vmem [resolvable:$true] %s283
      %286 = dma.vmem_to_hbm [thread:$0]  %s284, 16, %s4, [#allocation8]
    $region33: #{tpu_custom_call.1} parent=1 // pred_fallthru
      _
    // Predicated region
    $region34: #{tpu_custom_call.1} parent=1 // pred_check
      _
    $region35: #{tpu_custom_call.1} parent=1 // pred_check_branch
      %288 = sbr.rel (0) target = $region37
    $region36: #{tpu_custom_call.1} parent=1 // pred_region
      %289 = dma.done [#allocation8], 16
    $region37: #{tpu_custom_call.1} parent=1 // pred_fallthru
      _
    %290 = vsyncpa [#allocation7], 1
    %291 = vsyncpa [#allocation8], 1

</llo_original>
